<compile_context>
chip_gen: v6e
topology: v6e:2x2x1
jax: 0.10.0
libtpu: 0.0.40
codegen_flags: <defaults>
</compile_context>

<pallas_src>
import functools

import jax
import jax.numpy as jnp
from jax import lax
from jax.experimental import pallas as pl
from jax.experimental.pallas import tpu as pltpu

_INV_SQRT2 = 0.7071067811865476
_SQRT_2_OVER_PI = 0.7978845608028654
_LN_EPS = 1e-12          # matches nn.LayerNorm(hidden, eps=1e-12) in the module
_MIB = 1024 * 1024


# ----------------------------- kernel helpers -------------------------------

def _gelu(h, approx):
    if approx:
        # tanh-approx GELU: transcendental goes to the EUP slot (frees VALU on v5e).
        return 0.5 * h * (1.0 + jnp.tanh(
            jnp.float32(_SQRT_2_OVER_PI) * (h + jnp.float32(0.044715) * h * h * h)))
    # exact erf GELU (matches torch.nn.functional.gelu default)
    return 0.5 * h * (1.0 + lax.erf(h * jnp.float32(_INV_SQRT2)))


def _layernorm_residual(x, y, g, b):
    z = x + y                                                # residual add (f32)
    mean = jnp.mean(z, axis=-1, keepdims=True)
    cz = z - mean
    var = jnp.mean(cz * cz, axis=-1, keepdims=True)
    return cz * lax.rsqrt(var + jnp.float32(_LN_EPS)) * g + b


# ------------------------------- kernels ------------------------------------

def _ffn_resident_kernel(x_ref, w1_ref, b1_ref, w2_ref, b2_ref, g_ref, beta_ref,
                         o_ref, *, approx_gelu):
    """W1/W2 fully VMEM-resident; single grid axis over row tiles (no k loop)."""
    x = x_ref[...]                                           # (tm, H) f32
    h = jnp.dot(x.astype(jnp.bfloat16), w1_ref[...],
                preferred_element_type=jnp.float32) + b1_ref[...]
    h = _gelu(h, approx_gelu)
    y = jnp.dot(h.astype(jnp.bfloat16), w2_ref[...],
                preferred_element_type=jnp.float32) + b2_ref[...]
    o_ref[...] = _layernorm_residual(x, y, g_ref[...], beta_ref[...]).astype(o_ref.dtype)


def _ffn_streamed_kernel(x_ref, w1_ref, b1_ref, w2_ref, b2_ref, g_ref, beta_ref,
                         o_ref, xbf_ref, *, approx_gelu):
    """Intermediate dim streamed over the trailing ("arbitrary") k axis.

    The partial dense_2 results are accumulated directly into the resident
    f32 output block (no separate accumulator scratch).
    """
    k = pl.program_id(1)
    nk = pl.num_programs(1)

    # Hoist the x -> bf16 cast out of the k loop (once per row tile).
    @pl.when(k == 0)
    def _():
        xbf_ref[...] = x_ref[...].astype(jnp.bfloat16)

    # dense_1 tile: (tm, H) @ (H, ti); bf16 operands, f32 accumulate.
    h = jnp.dot(xbf_ref[...], w1_ref[...],
                preferred_element_type=jnp.float32) + b1_ref[...]
    h = _gelu(h, approx_gelu)
    # dense_2 tile: (tm, ti) @ (ti, H).
    p = jnp.dot(h.astype(jnp.bfloat16), w2_ref[...],
                preferred_element_type=jnp.float32)

    # First k step writes directly (no zero-init pass); later steps accumulate.
    @pl.when(k == 0)
    def _():
        o_ref[...] = p

    @pl.when(k != 0)
    def _():
        o_ref[...] += p

    @pl.when(k == nk - 1)
    def _():
        x = x_ref[...]                                       # f32 read only here (residual)
        y = o_ref[...] + b2_ref[...]
        o_ref[...] = _layernorm_residual(x, y, g_ref[...], beta_ref[...]).astype(o_ref.dtype)


# ------------------------------ wrapper --------------------------------------

def _round_up(x, m):
    return (x + m - 1) // m * m


def _pick_tile(total, want, align):
    """Largest tile <= want that divides total (multiples of `align`)."""
    t = min(want, total)
    if total % align != 0:
        return total
    if total % t != 0:
        t = max((t // align) * align, align)
        while total % t != 0:
            t -= align
    return t


def _resident_vmem_bytes(tm, H, I, weight_bufs):
    weights = 2 * H * I * 2 * weight_bufs          # bf16 W1 + W2
    x_io = tm * H * 4 * 2 * 2                      # x in + out, double-buffered
    small = (I + 3 * H) * 4 * 2                    # biases / LN params
    temps = tm * I * 6 + tm * H * 16               # (tm, I) f32 + bf16 intermediate etc.
    return weights + x_io + small + temps


def _streamed_vmem_bytes(tm, ti, H, I):
    weights = 2 * H * ti * 2 * 2                   # bf16 W1/W2 tiles, double-buffered
    x_io = tm * H * 4 * 2 * 2                      # x in + f32 out/acc, double-buffered
    xbf = tm * H * 2                               # hoisted bf16 x scratch
    small = (ti + 3 * H) * 4 * 2
    temps = tm * ti * 6 + tm * H * 16
    return weights + x_io + xbf + small + temps


def feed_forward(x, w1, b1, w2, b2, gamma, beta, *,
                 tm=512, ti=1024, mode="auto",
                 approx_gelu=False,
                 single_buffer_weights=False,
                 vmem_budget_bytes=48 * _MIB):
    """Fused BERT FFN block: LayerNorm(x + dense_2(gelu(dense_1(x)))).

    x: (B, S, H); w1: (H, I); w2: (I, H)  (weights stored [in, out], i.e. torch W.T).
    mode: "auto" | "resident" | "streamed".
      resident: W1/W2 full-array constant-index blocks (one weight DMA total).
      streamed: I tiled over an "arbitrary" k axis, f32 accumulation in o_ref.
    single_buffer_weights: request pl.Buffered(1) on the resident weight blocks
      (useful on v7x's 64 MiB/TC VMEM with BERT-large-sized weights).
    """
    B, S, H = x.shape
    I = w1.shape[1]
    M = B * S

    # Row tile: large enough to be compute-bound even when streaming
    # (~tm FLOP per weight byte); shrinks for tiny M; rows multiple of 8.
    tm_eff = min(tm, _round_up(M, 8))
    M_pad = _round_up(M, tm_eff)
    # Megacore (v7x has 2 TCs): prefer >= 2 row tiles so neither core idles.
    if M_pad // tm_eff < 2 and tm_eff >= 512 and tm_eff % 16 == 0:
        tm_eff //= 2
        M_pad = _round_up(M, tm_eff)

    weight_bufs = 1 if single_buffer_weights else 2
    if mode == "auto":
        mode = ("resident"
                if _resident_vmem_bytes(tm_eff, H, I, weight_bufs) <= vmem_budget_bytes
                else "streamed")

    x2 = x.reshape(M, H).astype(jnp.float32)
    if M_pad != M:                                 # pad only when not tile-aligned
        x2 = jnp.pad(x2, ((0, M_pad - M), (0, 0)))

    # bf16 weights for the MXU; biases / LN params stay f32.
    w1b = w1.astype(jnp.bfloat16)
    w2b = w2.astype(jnp.bfloat16)
    b1r = b1.reshape(1, I).astype(jnp.float32)
    b2r = b2.reshape(1, H).astype(jnp.float32)
    gr = gamma.reshape(1, H).astype(jnp.float32)
    br = beta.reshape(1, H).astype(jnp.float32)

    if mode == "resident":
        wkw = dict(pipeline_mode=pl.Buffered(1)) if single_buffer_weights else {}
        est = _resident_vmem_bytes(tm_eff, H, I, weight_bufs)
        vmem_limit = int(min(max(est * 1.25, 32 * _MIB), 56 * _MIB))
        out = pl.pallas_call(
            functools.partial(_ffn_resident_kernel, approx_gelu=approx_gelu),
            out_shape=jax.ShapeDtypeStruct((M_pad, H), jnp.float32),
            grid_spec=pltpu.PrefetchScalarGridSpec(
                num_scalar_prefetch=0,
                grid=(M_pad // tm_eff,),
                in_specs=[
                    pl.BlockSpec((tm_eff, H), lambda i: (i, 0)),     # x rows
                    pl.BlockSpec((H, I), lambda i: (0, 0), **wkw),   # W1 (resident)
                    pl.BlockSpec((1, I), lambda i: (0, 0)),          # b1
                    pl.BlockSpec((I, H), lambda i: (0, 0), **wkw),   # W2 (resident)
                    pl.BlockSpec((1, H), lambda i: (0, 0)),          # b2
                    pl.BlockSpec((1, H), lambda i: (0, 0)),          # LN gamma
                    pl.BlockSpec((1, H), lambda i: (0, 0)),          # LN beta
                ],
                out_specs=pl.BlockSpec((tm_eff, H), lambda i: (i, 0)),
            ),
            compiler_params=pltpu.CompilerParams(
                dimension_semantics=("parallel",),
                vmem_limit_bytes=vmem_limit),
        )(x2, w1b, b1r, w2b, b2r, gr, br)
    else:
        # Intermediate-dim tile: stream W1/W2 instead of holding them resident.
        ti_eff = _pick_tile(I, ti, 128)
        if I % 128 == 0:
            while ti_eff > 128 and _streamed_vmem_bytes(tm_eff, ti_eff, H, I) > vmem_budget_bytes:
                ti_eff = _pick_tile(I, ti_eff // 2, 128)
        est = _streamed_vmem_bytes(tm_eff, ti_eff, H, I)
        vmem_limit = int(min(max(est * 1.25, 32 * _MIB), 56 * _MIB))
        out = pl.pallas_call(
            functools.partial(_ffn_streamed_kernel, approx_gelu=approx_gelu),
            out_shape=jax.ShapeDtypeStruct((M_pad, H), jnp.float32),
            grid_spec=pltpu.PrefetchScalarGridSpec(
                num_scalar_prefetch=0,
                grid=(M_pad // tm_eff, I // ti_eff),
                in_specs=[
                    pl.BlockSpec((tm_eff, H), lambda i, k: (i, 0)),   # x (resident over k)
                    pl.BlockSpec((H, ti_eff), lambda i, k: (0, k)),   # W1 tile
                    pl.BlockSpec((1, ti_eff), lambda i, k: (0, k)),   # b1 tile
                    pl.BlockSpec((ti_eff, H), lambda i, k: (k, 0)),   # W2 tile
                    pl.BlockSpec((1, H), lambda i, k: (0, 0)),        # b2
                    pl.BlockSpec((1, H), lambda i, k: (0, 0)),        # LN gamma
                    pl.BlockSpec((1, H), lambda i, k: (0, 0)),        # LN beta
                ],
                out_specs=pl.BlockSpec((tm_eff, H), lambda i, k: (i, 0)),
                scratch_shapes=[pltpu.VMEM((tm_eff, H), jnp.bfloat16)],  # hoisted bf16 x
            ),
            compiler_params=pltpu.CompilerParams(
                dimension_semantics=("parallel", "arbitrary"),
                vmem_limit_bytes=vmem_limit),
        )(x2, w1b, b1r, w2b, b2r, gr, br)

    if M_pad != M:
        out = out[:M]
    return out.reshape(B, S, H).astype(x.dtype)


# ------------------------------ references -----------------------------------

def reference_f32(x, w1, b1, w2, b2, gamma, beta):
    """Pure-f32 semantic reference (matches the PyTorch module in eval mode)."""
    h = jnp.dot(x, w1) + b1
    h = 0.5 * h * (1.0 + lax.erf(h * _INV_SQRT2))
    y = jnp.dot(h, w2) + b2
    z = x + y
    mean = jnp.mean(z, axis=-1, keepdims=True)
    var = jnp.mean((z - mean) ** 2, axis=-1, keepdims=True)
    return (z - mean) / jnp.sqrt(var + _LN_EPS) * gamma + beta


def reference_bf16_matmul(x, w1, b1, w2, b2, gamma, beta):
    """Same math, but matmul operands rounded to bf16 (as the kernel feeds the MXU)."""
    h = jnp.dot(x.astype(jnp.bfloat16), w1.astype(jnp.bfloat16),
                preferred_element_type=jnp.float32) + b1
    h = 0.5 * h * (1.0 + lax.erf(h * _INV_SQRT2))
    y = jnp.dot(h.astype(jnp.bfloat16), w2.astype(jnp.bfloat16),
                preferred_element_type=jnp.float32) + b2
    z = x + y
    mean = jnp.mean(z, axis=-1, keepdims=True)
    var = jnp.mean((z - mean) ** 2, axis=-1, keepdims=True)
    return (z - mean) / jnp.sqrt(var + _LN_EPS) * gamma + beta


if __name__ == "__main__":
    # Small TPU-friendly BERTArgs: hidden_size=128, intermediate_size=512.
    # S=9 makes M=18 (not tile-aligned) to exercise the padding path.
    B, S, H, I = 2, 9, 128, 512

    key = jax.random.PRNGKey(0)
    kx, k1, k2, k3, k4 = jax.random.split(key, 5)

    x = jax.random.normal(kx, (B, S, H), dtype=jnp.float32)
    # Linear weights stored as [in, out] (transposed vs torch's [out, in]).
    w1 = jax.random.normal(k1, (H, I), dtype=jnp.float32) * (1.0 / jnp.sqrt(H))
    b1 = jax.random.normal(k2, (I,), dtype=jnp.float32) * 0.02
    w2 = jax.random.normal(k3, (I, H), dtype=jnp.float32) * (1.0 / jnp.sqrt(I))
    b2 = jax.random.normal(k4, (H,), dtype=jnp.float32) * 0.02
    gamma = jnp.ones((H,), dtype=jnp.float32)
    beta = jnp.zeros((H,), dtype=jnp.float32)

    ref_q = reference_bf16_matmul(x, w1, b1, w2, b2, gamma, beta)
    ref = reference_f32(x, w1, b1, w2, b2, gamma, beta)

    # Path 1: auto -> resident (weights fit VMEM at these sizes, no k axis).
    out_res = jax.block_until_ready(feed_forward(x, w1, b1, w2, b2, gamma, beta))
    assert out_res.shape == (B, S, H)
    assert jnp.allclose(out_res, ref_q, atol=2e-3, rtol=2e-3), float(
        jnp.max(jnp.abs(out_res - ref_q)))
    assert jnp.allclose(out_res, ref, atol=5e-2, rtol=5e-2), float(
        jnp.max(jnp.abs(out_res - ref)))

    # Path 2: forced streamed with ti=128 (exercises the k-axis accumulator,
    # first-step direct write, and hoisted bf16-x cast).
    out_str = jax.block_until_ready(
        feed_forward(x, w1, b1, w2, b2, gamma, beta, mode="streamed", ti=128))
    assert out_str.shape == (B, S, H)
    assert jnp.allclose(out_str, ref_q, atol=2e-3, rtol=2e-3), float(
        jnp.max(jnp.abs(out_str - ref_q)))
    assert jnp.allclose(out_str, ref, atol=5e-2, rtol=5e-2), float(
        jnp.max(jnp.abs(out_str - ref)))

    print("KERNEL_OK")
</pallas_src>

<mosaic_0001>
module attributes {stable_mosaic.version = 11 : i64} {
  func.func @_ffn_resident_kernel(%arg0: i32, %arg1: memref<24x128xf32, #tpu.memory_space<vmem>>, %arg2: memref<128x512xbf16, #tpu.memory_space<vmem>>, %arg3: memref<1x512xf32, #tpu.memory_space<vmem>>, %arg4: memref<512x128xbf16, #tpu.memory_space<vmem>>, %arg5: memref<1x128xf32, #tpu.memory_space<vmem>>, %arg6: memref<1x128xf32, #tpu.memory_space<vmem>>, %arg7: memref<1x128xf32, #tpu.memory_space<vmem>>, %arg8: memref<24x128xf32, #tpu.memory_space<vmem>>) attributes {dimension_semantics = [#tpu.dimension_semantics<parallel>], iteration_bounds = array<i64: 1>, scalar_prefetch = 0 : i64, scratch_operands = 0 : i64, tpu.core_type = #tpu.core_type<tc>, window_params = [{transform_indices = @transform_0, window_bounds = array<i64: 24, 128>}, {pipeline_mode = #tpu.pipeline_mode<synchronous>, transform_indices = @transform_1, window_bounds = array<i64: 128, 512>}, {pipeline_mode = #tpu.pipeline_mode<synchronous>, transform_indices = @transform_2, window_bounds = array<i64: 1, 512>}, {pipeline_mode = #tpu.pipeline_mode<synchronous>, transform_indices = @transform_3, window_bounds = array<i64: 512, 128>}, {pipeline_mode = #tpu.pipeline_mode<synchronous>, transform_indices = @transform_4, window_bounds = array<i64: 1, 128>}, {pipeline_mode = #tpu.pipeline_mode<synchronous>, transform_indices = @transform_5, window_bounds = array<i64: 1, 128>}, {pipeline_mode = #tpu.pipeline_mode<synchronous>, transform_indices = @transform_6, window_bounds = array<i64: 1, 128>}, {transform_indices = @transform_7, window_bounds = array<i64: 24, 128>}]} {
    %c0 = arith.constant 0 : index
    %c0_0 = arith.constant 0 : index
    %0 = vector.load %arg1[%c0, %c0_0] : memref<24x128xf32, #tpu.memory_space<vmem>>, vector<24x128xf32>
    %1 = arith.truncf %0 : vector<24x128xf32> to vector<24x128xbf16>
    %c0_1 = arith.constant 0 : index
    %c0_2 = arith.constant 0 : index
    %2 = vector.load %arg2[%c0_1, %c0_2] : memref<128x512xbf16, #tpu.memory_space<vmem>>, vector<128x512xbf16>
    %cst = arith.constant dense<0.000000e+00> : vector<24x512xf32>
    %3 = tpu.matmul %1, %2, %cst {dimension_numbers = #tpu.dot_dimension_numbers<[1], [0], [0], [1], [0, 0, 1, 1], [], []>} : vector<24x128xbf16>, vector<128x512xbf16>, vector<24x512xf32> -> vector<24x512xf32>
    %c0_3 = arith.constant 0 : index
    %c0_4 = arith.constant 0 : index
    %4 = vector.load %arg3[%c0_3, %c0_4] : memref<1x512xf32, #tpu.memory_space<vmem>>, vector<1x512xf32>
    %5 = vector.broadcast %4 : vector<1x512xf32> to vector<24x512xf32>
    %6 = arith.addf %3, %5 : vector<24x512xf32>
    %cst_5 = arith.constant 5.000000e-01 : f32
    %7 = vector.broadcast %cst_5 : f32 to vector<24x512xf32>
    %8 = arith.mulf %7, %6 : vector<24x512xf32>
    %cst_6 = arith.constant 0.707106769 : f32
    %9 = vector.broadcast %cst_6 : f32 to vector<24x512xf32>
    %10 = arith.mulf %6, %9 : vector<24x512xf32>
    %11 = math.erf %10 : vector<24x512xf32>
    %cst_7 = arith.constant 1.000000e+00 : f32
    %12 = vector.broadcast %cst_7 : f32 to vector<24x512xf32>
    %13 = arith.addf %12, %11 : vector<24x512xf32>
    %14 = arith.mulf %8, %13 : vector<24x512xf32>
    %15 = arith.truncf %14 : vector<24x512xf32> to vector<24x512xbf16>
    %c0_8 = arith.constant 0 : index
    %c0_9 = arith.constant 0 : index
    %16 = vector.load %arg4[%c0_8, %c0_9] : memref<512x128xbf16, #tpu.memory_space<vmem>>, vector<512x128xbf16>
    %cst_10 = arith.constant dense<0.000000e+00> : vector<24x128xf32>
    %17 = tpu.matmul %15, %16, %cst_10 {dimension_numbers = #tpu.dot_dimension_numbers<[1], [0], [0], [1], [0, 0, 1, 1], [], []>} : vector<24x512xbf16>, vector<512x128xbf16>, vector<24x128xf32> -> vector<24x128xf32>
    %c0_11 = arith.constant 0 : index
    %c0_12 = arith.constant 0 : index
    %18 = vector.load %arg5[%c0_11, %c0_12] : memref<1x128xf32, #tpu.memory_space<vmem>>, vector<1x128xf32>
    %19 = vector.broadcast %18 : vector<1x128xf32> to vector<24x128xf32>
    %20 = arith.addf %17, %19 : vector<24x128xf32>
    %c0_13 = arith.constant 0 : index
    %c0_14 = arith.constant 0 : index
    %21 = vector.load %arg6[%c0_13, %c0_14] : memref<1x128xf32, #tpu.memory_space<vmem>>, vector<1x128xf32>
    %c0_15 = arith.constant 0 : index
    %c0_16 = arith.constant 0 : index
    %22 = vector.load %arg7[%c0_15, %c0_16] : memref<1x128xf32, #tpu.memory_space<vmem>>, vector<1x128xf32>
    %23 = arith.addf %0, %20 : vector<24x128xf32>
    %cst_17 = arith.constant dense<0.000000e+00> : vector<24xf32>
    %24 = vector.multi_reduction <add>, %23, %cst_17 [1] : vector<24x128xf32> to vector<24xf32>
    %25 = vector.shape_cast %24 : vector<24xf32> to vector<24x1xf32>
    %cst_18 = arith.constant 1.280000e+02 : f32
    %26 = vector.broadcast %cst_18 : f32 to vector<24x1xf32>
    %27 = arith.divf %25, %26 : vector<24x1xf32>
    %28 = vector.broadcast %27 : vector<24x1xf32> to vector<24x128xf32>
    %29 = arith.subf %23, %28 : vector<24x128xf32>
    %30 = arith.mulf %29, %29 : vector<24x128xf32>
    %cst_19 = arith.constant dense<0.000000e+00> : vector<24xf32>
    %31 = vector.multi_reduction <add>, %30, %cst_19 [1] : vector<24x128xf32> to vector<24xf32>
    %32 = vector.shape_cast %31 : vector<24xf32> to vector<24x1xf32>
    %cst_20 = arith.constant 1.280000e+02 : f32
    %33 = vector.broadcast %cst_20 : f32 to vector<24x1xf32>
    %34 = arith.divf %32, %33 : vector<24x1xf32>
    %cst_21 = arith.constant 9.99999996E-13 : f32
    %35 = vector.broadcast %cst_21 : f32 to vector<24x1xf32>
    %36 = arith.addf %34, %35 : vector<24x1xf32>
    %37 = math.rsqrt %36 : vector<24x1xf32>
    %38 = vector.broadcast %37 : vector<24x1xf32> to vector<24x128xf32>
    %39 = arith.mulf %29, %38 : vector<24x128xf32>
    %40 = vector.broadcast %21 : vector<1x128xf32> to vector<24x128xf32>
    %41 = arith.mulf %39, %40 : vector<24x128xf32>
    %42 = vector.broadcast %22 : vector<1x128xf32> to vector<24x128xf32>
    %43 = arith.addf %41, %42 : vector<24x128xf32>
    %c0_22 = arith.constant 0 : index
    %c0_23 = arith.constant 0 : index
    %44 = vector.load %arg8[%c0_22, %c0_23] : memref<24x128xf32, #tpu.memory_space<vmem>>, vector<24x128xf32>
    tpu.vector_store %arg8[%c0_22, %c0_23], %43 {strides = array<i32>} : memref<24x128xf32, #tpu.memory_space<vmem>>, vector<24x128xf32>,
    return
  }
  func.func @transform_0(%arg0: i32) -> (i32, i32) {
    %c0_i32 = arith.constant 0 : i32
    %c0_i32_0 = arith.constant 0 : i32
    return %arg0, %c0_i32 : i32, i32
  }
  func.func @transform_1(%arg0: i32) -> (i32, i32) {
    %c0_i32 = arith.constant 0 : i32
    %c0_i32_0 = arith.constant 0 : i32
    %c0_i32_1 = arith.constant 0 : i32
    return %c0_i32, %c0_i32_0 : i32, i32
  }
  func.func @transform_2(%arg0: i32) -> (i32, i32) {
    %c0_i32 = arith.constant 0 : i32
    %c0_i32_0 = arith.constant 0 : i32
    %c0_i32_1 = arith.constant 0 : i32
    return %c0_i32, %c0_i32_0 : i32, i32
  }
  func.func @transform_3(%arg0: i32) -> (i32, i32) {
    %c0_i32 = arith.constant 0 : i32
    %c0_i32_0 = arith.constant 0 : i32
    %c0_i32_1 = arith.constant 0 : i32
    return %c0_i32, %c0_i32_0 : i32, i32
  }
  func.func @transform_4(%arg0: i32) -> (i32, i32) {
    %c0_i32 = arith.constant 0 : i32
    %c0_i32_0 = arith.constant 0 : i32
    %c0_i32_1 = arith.constant 0 : i32
    return %c0_i32, %c0_i32_0 : i32, i32
  }
  func.func @transform_5(%arg0: i32) -> (i32, i32) {
    %c0_i32 = arith.constant 0 : i32
    %c0_i32_0 = arith.constant 0 : i32
    %c0_i32_1 = arith.constant 0 : i32
    return %c0_i32, %c0_i32_0 : i32, i32
  }
  func.func @transform_6(%arg0: i32) -> (i32, i32) {
    %c0_i32 = arith.constant 0 : i32
    %c0_i32_0 = arith.constant 0 : i32
    %c0_i32_1 = arith.constant 0 : i32
    return %c0_i32, %c0_i32_0 : i32, i32
  }
  func.func @transform_7(%arg0: i32) -> (i32, i32) {
    %c0_i32 = arith.constant 0 : i32
    %c0_i32_0 = arith.constant 0 : i32
    return %arg0, %c0_i32 : i32, i32
  }
}

</mosaic_0001>

<llo_original>
// kernel: tpu_custom_call.1
$region0: #{tpu_custom_call.1}
  #allocation0 [shape = 'u32[]', space=smem, size = 0x4, offset = 0x4, fixed_abs, tag = 'smem constant byte address 0x4 - core index']
  #allocation1 [shape = 'u32[144,128]{1,0:T(1,128)}', space=vmem, size = 0x12000, scoped, tag = 'internal scratch']
  %s0 = inlined_call_operand.hbm [shape: f32[24,128], index: 0, kind: input, shape index: {}]
  %s1 = inlined_call_operand.hbm [shape: bf16[128,512], index: 1, kind: input, shape index: {}]
  %s2 = inlined_call_operand.hbm [shape: f32[1,512], index: 2, kind: input, shape index: {}]
  %s3 = inlined_call_operand.hbm [shape: bf16[512,128], index: 3, kind: input, shape index: {}]
  %s4 = inlined_call_operand.vmem [shape: f32[1,128], index: 4, kind: input, shape index: {}]
  %s5 = inlined_call_operand.vmem [shape: f32[1,128], index: 5, kind: input, shape index: {}]
  %s6 = inlined_call_operand.vmem [shape: f32[1,128], index: 6, kind: input, shape index: {}]
  %s7 = inlined_call_operand.hbm [shape: f32[24,128], index: 7, kind: output, shape index: {}]
  %s8 = sld [smem:[#allocation0]]
  $region54: #{tpu_custom_call.1} parent=0
    _
  %s10 = ssub.s32 1, %s8
  %s11 = scalar_select 0, %s10, %s8
  $region1: #{tpu_custom_call.1} parent=0
    #allocation2 [shape = 'u8[12288]{0}', space=vmem, size = 0x3000, scoped, tag = 'input window, operand 0, single buffered']
    #allocation3 [shape = 's32[1]{0}', space=sflag, size = 0x4, scoped, tag = 'scoped memory for tpu_custom_call.1']
    #allocation4 [shape = 's32[1]{0}', space=sflag, size = 0x4, scoped, tag = 'scoped memory for tpu_custom_call.1']
    #allocation5 [shape = 'u8[131072]{0}', space=vmem, size = 0x20000, scoped, tag = 'input window, operand 1, single buffered']
    #allocation6 [shape = 's32[1]{0}', space=sflag, size = 0x4, scoped, tag = 'scoped memory for tpu_custom_call.1']
    #allocation7 [shape = 'u8[2048]{0}', space=vmem, size = 0x800, scoped, tag = 'input window, operand 2, single buffered']
    #allocation8 [shape = 'u8[131072]{0}', space=vmem, size = 0x20000, scoped, tag = 'input window, operand 3, single buffered']
    #allocation9 [shape = 's32[1]{0}', space=sflag, size = 0x4, scoped, tag = 'scoped memory for tpu_custom_call.1']
    #allocation10 [shape = 'u8[12288]{0}', space=vmem, size = 0x3000, scoped, tag = 'output window, operand 0, single buffered']
    %12 = vsyncpa [#allocation3], 0
    %13 = vsyncpa [#allocation6], 0
    %14 = vsyncpa [#allocation9], 0
    %15 = vsyncpa [#allocation4], 0
    // Predicated region
    $region2: #{tpu_custom_call.1} parent=1 // pred_check
      _
    $region3: #{tpu_custom_call.1} parent=1 // pred_check_branch
      %17 = sbr.rel (0) target = $region5
    $region4: #{tpu_custom_call.1} parent=1 // pred_region
      %s19 = ssub.s32 384, 384
      %20 = vsyncadd [#allocation3], %s19
      %s21 = sshll.u32 [#allocation2], 4
      %s22 = int_to_ptr.vmem [resolvable:$true] %s21
      %27 = dma.hbm_to_vmem [thread:$0]  %s0, 384, %s22, [#allocation3], 128, 128, 8
    $region5: #{tpu_custom_call.1} parent=1 // pred_fallthru
      _
    // Predicated region
    $region6: #{tpu_custom_call.1} parent=1 // pred_check
      _
    $region7: #{tpu_custom_call.1} parent=1 // pred_check_branch
      %29 = sbr.rel (0) target = $region9
    $region8: #{tpu_custom_call.1} parent=1 // pred_region
      %s31 = ssub.s32 4096, 4096
      %32 = vsyncadd [#allocation6], %s31
      %s33 = sshll.u32 [#allocation5], 4
      %s34 = int_to_ptr.vmem [resolvable:$true] %s33
      %39 = dma.hbm_to_vmem [thread:$0]  %s1, 4096, %s34, [#allocation6], 256, 256, 16
    $region9: #{tpu_custom_call.1} parent=1 // pred_fallthru
      _
    // Predicated region
    $region10: #{tpu_custom_call.1} parent=1 // pred_check
      _
    $region11: #{tpu_custom_call.1} parent=1 // pred_check_branch
      %41 = sbr.rel (0) target = $region13
    $region12: #{tpu_custom_call.1} parent=1 // pred_region
      %s43 = ssub.s32 64, 64
      %44 = vsyncadd [#allocation6], %s43
      %s46 = sshll.u32 [#allocation7], 4
      %s47 = int_to_ptr.vmem [resolvable:$true] %s46
      %49 = dma.hbm_to_vmem [thread:$0]  %s2, 64, %s47, [#allocation6]
    $region13: #{tpu_custom_call.1} parent=1 // pred_fallthru
      _
    // Predicated region
    $region14: #{tpu_custom_call.1} parent=1 // pred_check
      _
    $region15: #{tpu_custom_call.1} parent=1 // pred_check_branch
      %51 = sbr.rel (0) target = $region17
    $region16: #{tpu_custom_call.1} parent=1 // pred_region
      %s53 = ssub.s32 4096, 4096
      %54 = vsyncadd [#allocation9], %s53
      %s55 = sshll.u32 [#allocation8], 4
      %s56 = int_to_ptr.vmem [resolvable:$true] %s55
      %61 = dma.hbm_to_vmem [thread:$0]  %s3, 4096, %s56, [#allocation9], 64, 64, 4
    $region17: #{tpu_custom_call.1} parent=1 // pred_fallthru
      _
    // Predicated region
    $region18: #{tpu_custom_call.1} parent=1 // pred_check
      _
    $region19: #{tpu_custom_call.1} parent=1 // pred_check_branch
      %63 = sbr.rel (0) target = $region21
    $region20: #{tpu_custom_call.1} parent=1 // pred_region
      _
    $region21: #{tpu_custom_call.1} parent=1 // pred_fallthru
      _
    // Predicated region
    $region22: #{tpu_custom_call.1} parent=1 // pred_check
      _
    $region23: #{tpu_custom_call.1} parent=1 // pred_check_branch
      %65 = sbr.rel (0) target = $region25
    $region24: #{tpu_custom_call.1} parent=1 // pred_region
      _
    $region25: #{tpu_custom_call.1} parent=1 // pred_fallthru
      _
    // Predicated region
    $region26: #{tpu_custom_call.1} parent=1 // pred_check
      _
    $region27: #{tpu_custom_call.1} parent=1 // pred_check_branch
      %67 = sbr.rel (0) target = $region29
    $region28: #{tpu_custom_call.1} parent=1 // pred_region
      _
    $region29: #{tpu_custom_call.1} parent=1 // pred_fallthru
      _
    // Predicated region
    $region30: #{tpu_custom_call.1} parent=1 // pred_check
      _
    $region31: #{tpu_custom_call.1} parent=1 // pred_check_branch
      %69 = sbr.rel (0) target = $region33
    $region32: #{tpu_custom_call.1} parent=1 // pred_region
      %70 = dma.done [#allocation3], 384
    $region33: #{tpu_custom_call.1} parent=1 // pred_fallthru
      _
    // Predicated region
    $region34: #{tpu_custom_call.1} parent=1 // pred_check
      _
    $region35: #{tpu_custom_call.1} parent=1 // pred_check_branch
      %72 = sbr.rel (0) target = $region37
    $region36: #{tpu_custom_call.1} parent=1 // pred_region
      %73 = dma.done [#allocation6], 4096
    $region37: #{tpu_custom_call.1} parent=1 // pred_fallthru
      _
    // Predicated region
    $region38: #{tpu_custom_call.1} parent=1 // pred_check
      _
    $region39: #{tpu_custom_call.1} parent=1 // pred_check_branch
      %75 = sbr.rel (0) target = $region41
    $region40: #{tpu_custom_call.1} parent=1 // pred_region
      %76 = dma.done [#allocation6], 64
    $region41: #{tpu_custom_call.1} parent=1 // pred_fallthru
      _
    // Predicated region
    $region42: #{tpu_custom_call.1} parent=1 // pred_check
      _
    $region43: #{tpu_custom_call.1} parent=1 // pred_check_branch
      %78 = sbr.rel (0) target = $region45
    $region44: #{tpu_custom_call.1} parent=1 // pred_region
      %79 = dma.done [#allocation9], 4096
    $region45: #{tpu_custom_call.1} parent=1 // pred_fallthru
      _
    %v81 = vld [vmem:[#allocation2] sm:$0xff]
    %v82 = vld [vmem:[#allocation2 + $0x8] sm:$0xff]
    %v83 = vld [vmem:[#allocation2 + $0x10] sm:$0xff]
    %v84 = vpack.c.bf16 %v82, %v81
    %v85 = vpack.c.bf16 %v83, %v83
    %v86 = vld [vmem:[#allocation5] sm:$0xff]
    %v87 = vld [vmem:[#allocation5 + $0x8] sm:$0xff]
    %v88 = vld [vmem:[#allocation5 + $0x10] sm:$0xff]
    %v89 = vld [vmem:[#allocation5 + $0x18] sm:$0xff]
    %v90 = vld [vmem:[#allocation5 + $0x20] sm:$0xff]
    %v91 = vld [vmem:[#allocation5 + $0x28] sm:$0xff]
    %v92 = vld [vmem:[#allocation5 + $0x30] sm:$0xff]
    %v93 = vld [vmem:[#allocation5 + $0x38] sm:$0xff]
    %v94 = vld [vmem:[#allocation5 + $0x40] sm:$0xff]
    %v95 = vld [vmem:[#allocation5 + $0x48] sm:$0xff]
    %v96 = vld [vmem:[#allocation5 + $0x50] sm:$0xff]
    %v97 = vld [vmem:[#allocation5 + $0x58] sm:$0xff]
    %v98 = vld [vmem:[#allocation5 + $0x60] sm:$0xff]
    %v99 = vld [vmem:[#allocation5 + $0x68] sm:$0xff]
    %v100 = vld [vmem:[#allocation5 + $0x70] sm:$0xff]
    %v101 = vld [vmem:[#allocation5 + $0x78] sm:$0xff]
    %v102 = vld [vmem:[#allocation5 + $0x80] sm:$0xff]
    %v103 = vld [vmem:[#allocation5 + $0x88] sm:$0xff]
    %v104 = vld [vmem:[#allocation5 + $0x90] sm:$0xff]
    %v105 = vld [vmem:[#allocation5 + $0x98] sm:$0xff]
    %v106 = vld [vmem:[#allocation5 + $0xa0] sm:$0xff]
    %v107 = vld [vmem:[#allocation5 + $0xa8] sm:$0xff]
    %v108 = vld [vmem:[#allocation5 + $0xb0] sm:$0xff]
    %v109 = vld [vmem:[#allocation5 + $0xb8] sm:$0xff]
    %v110 = vld [vmem:[#allocation5 + $0xc0] sm:$0xff]
    %v111 = vld [vmem:[#allocation5 + $0xc8] sm:$0xff]
    %v112 = vld [vmem:[#allocation5 + $0xd0] sm:$0xff]
    %v113 = vld [vmem:[#allocation5 + $0xd8] sm:$0xff]
    %v114 = vld [vmem:[#allocation5 + $0xe0] sm:$0xff]
    %v115 = vld [vmem:[#allocation5 + $0xe8] sm:$0xff]
    %v116 = vld [vmem:[#allocation5 + $0xf0] sm:$0xff]
    %v117 = vld [vmem:[#allocation5 + $0xf8] sm:$0xff]
    %v118 = vld [vmem:[#allocation7] sm:$0xf]
    %v120 = vlaneseq
    %v121 = vshrl.u32 %v120, 7
    %v122 = vsub.s32 0, %v121
    %v123 = vrot.slane %v118, %v122
    %v124 = vlaneseq
    %v125 = vshrl.u32 %v124, 7
    %v126 = vsub.s32 1, %v125
    %v127 = vrot.slane %v118, %v126
    %v128 = vlaneseq
    %v129 = vshrl.u32 %v128, 7
    %v130 = vsub.s32 2, %v129
    %v131 = vrot.slane %v118, %v130
    %v132 = vlaneseq
    %v133 = vshrl.u32 %v132, 7
    %v134 = vsub.s32 3, %v133
    %v135 = vrot.slane %v118, %v134
    %v172 = vunpack.c.l.b16 %v86
    %v173 = vunpack.c.h.b16 %v86
    %v174 = vunpack.c.l.b16 %v87
    %v175 = vunpack.c.h.b16 %v87
    %v176 = vunpack.c.l.b16 %v88
    %v177 = vunpack.c.h.b16 %v88
    %v178 = vunpack.c.l.b16 %v89
    %v179 = vunpack.c.h.b16 %v89
    %v180 = vunpack.c.l.b16 %v90
    %v181 = vunpack.c.h.b16 %v90
    %v182 = vunpack.c.l.b16 %v91
    %v183 = vunpack.c.h.b16 %v91
    %v184 = vunpack.c.l.b16 %v92
    %v185 = vunpack.c.h.b16 %v92
    %v186 = vunpack.c.l.b16 %v93
    %v187 = vunpack.c.h.b16 %v93
    %v188 = vunpack.c.l.b16 %v94
    %v189 = vunpack.c.h.b16 %v94
    %v190 = vunpack.c.l.b16 %v95
    %v191 = vunpack.c.h.b16 %v95
    %v192 = vunpack.c.l.b16 %v96
    %v193 = vunpack.c.h.b16 %v96
    %v194 = vunpack.c.l.b16 %v97
    %v195 = vunpack.c.h.b16 %v97
    %v196 = vunpack.c.l.b16 %v98
    %v197 = vunpack.c.h.b16 %v98
    %v198 = vunpack.c.l.b16 %v99
    %v199 = vunpack.c.h.b16 %v99
    %v200 = vunpack.c.l.b16 %v100
    %v201 = vunpack.c.h.b16 %v100
    %v202 = vunpack.c.l.b16 %v101
    %v203 = vunpack.c.h.b16 %v101
    %v204 = vunpack.c.l.b16 %v102
    %v205 = vunpack.c.h.b16 %v102
    %v206 = vunpack.c.l.b16 %v103
    %v207 = vunpack.c.h.b16 %v103
    %v208 = vunpack.c.l.b16 %v104
    %v209 = vunpack.c.h.b16 %v104
    %v210 = vunpack.c.l.b16 %v105
    %v211 = vunpack.c.h.b16 %v105
    %v212 = vunpack.c.l.b16 %v106
    %v213 = vunpack.c.h.b16 %v106
    %v214 = vunpack.c.l.b16 %v107
    %v215 = vunpack.c.h.b16 %v107
    %v216 = vunpack.c.l.b16 %v108
    %v217 = vunpack.c.h.b16 %v108
    %v218 = vunpack.c.l.b16 %v109
    %v219 = vunpack.c.h.b16 %v109
    %v220 = vunpack.c.l.b16 %v110
    %v221 = vunpack.c.h.b16 %v110
    %v222 = vunpack.c.l.b16 %v111
    %v223 = vunpack.c.h.b16 %v111
    %v224 = vunpack.c.l.b16 %v112
    %v225 = vunpack.c.h.b16 %v112
    %v226 = vunpack.c.l.b16 %v113
    %v227 = vunpack.c.h.b16 %v113
    %v228 = vunpack.c.l.b16 %v114
    %v229 = vunpack.c.h.b16 %v114
    %v230 = vunpack.c.l.b16 %v115
    %v231 = vunpack.c.h.b16 %v115
    %v232 = vunpack.c.l.b16 %v116
    %v233 = vunpack.c.h.b16 %v116
    %v234 = vunpack.c.l.b16 %v117
    %v235 = vunpack.c.h.b16 %v117
    %v236 = vpack.c.b16 %v176, %v172
    %v237 = vpack.c.b16 %v177, %v173
    %v238 = vpack.c.b16 %v178, %v174
    %v239 = vpack.c.b16 %v179, %v175
    %v240 = vpack.c.b16 %v184, %v180
    %v241 = vpack.c.b16 %v185, %v181
    %v242 = vpack.c.b16 %v186, %v182
    %v243 = vpack.c.b16 %v187, %v183
    %v244 = vpack.c.b16 %v192, %v188
    %v245 = vpack.c.b16 %v193, %v189
    %v246 = vpack.c.b16 %v194, %v190
    %v247 = vpack.c.b16 %v195, %v191
    %v248 = vpack.c.b16 %v200, %v196
    %v249 = vpack.c.b16 %v201, %v197
    %v250 = vpack.c.b16 %v202, %v198
    %v251 = vpack.c.b16 %v203, %v199
    %v252 = vpack.c.b16 %v208, %v204
    %v253 = vpack.c.b16 %v209, %v205
    %v254 = vpack.c.b16 %v210, %v206
    %v255 = vpack.c.b16 %v211, %v207
    %v256 = vpack.c.b16 %v216, %v212
    %v257 = vpack.c.b16 %v217, %v213
    %v258 = vpack.c.b16 %v218, %v214
    %v259 = vpack.c.b16 %v219, %v215
    %v260 = vpack.c.b16 %v224, %v220
    %v261 = vpack.c.b16 %v225, %v221
    %v262 = vpack.c.b16 %v226, %v222
    %v263 = vpack.c.b16 %v227, %v223
    %v264 = vpack.c.b16 %v232, %v228
    %v265 = vpack.c.b16 %v233, %v229
    %v266 = vpack.c.b16 %v234, %v230
    %v267 = vpack.c.b16 %v235, %v231
    %300 = vmatprep.subr.bf16.mxu0 %v265
    %301 = vmatpush1.bf16.msra.mxu0 %v264
    %302 = vmatprep.subr.bf16.mxu0 %v261
    %303 = vmatpush1.bf16.msra.mxu0 %v260
    %304 = vmatprep.subr.bf16.mxu0 %v257
    %305 = vmatpush1.bf16.msra.mxu0 %v256
    %306 = vmatprep.subr.bf16.mxu0 %v253
    %307 = vmatpush1.bf16.msra.mxu0 %v252
    %308 = vmatprep.subr.bf16.mxu0 %v249
    %309 = vmatpush1.bf16.msra.mxu0 %v248
    %310 = vmatprep.subr.bf16.mxu0 %v245
    %311 = vmatpush1.bf16.msra.mxu0 %v244
    %312 = vmatprep.subr.bf16.mxu0 %v241
    %313 = vmatpush1.bf16.msra.mxu0 %v240
    %314 = vmatprep.subr.bf16.mxu0 %v237
    %315 = vmatpush1.bf16.msra.mxu0 %v236
    %316 = vmatprep.subr.bf16.mxu0 0
    %317 = vmatpush2.bf16.msra.mxu0 0
    %318 = vmatprep.subr.bf16.mxu0 0
    %319 = vmatpush2.bf16.msra.mxu0 0
    %320 = vmatprep.subr.bf16.mxu0 0
    %321 = vmatpush2.bf16.msra.mxu0 0
    %322 = vmatprep.subr.bf16.mxu0 0
    %323 = vmatpush2.bf16.msra.mxu0 0
    %324 = vmatprep.subr.bf16.mxu0 0
    %325 = vmatpush2.bf16.msra.mxu0 0
    %326 = vmatprep.subr.bf16.mxu0 0
    %327 = vmatpush2.bf16.msra.mxu0 0
    %328 = vmatprep.subr.bf16.mxu0 0
    %329 = vmatpush2.bf16.msra.mxu0 0
    %330 = vmatprep.subr.bf16.mxu0 0
    %331 = vmatpush2.bf16.msra.mxu0 0
    %332 = vmatprep.mubr.bf16.mxu0 0
    %333 = vmatmul.mubr.bf16.gmra.mxu0 %v84
    %v334 = vpop.f32.mrf.mxu0
    %v335 = vadd.f32 %v123, %v334
    %v336 = vpop.f32.mrf.mxu0
    %v337 = vadd.f32 %v127, %v336
    %v338 = vpop.f32.mrf.mxu0
    %v339 = vadd.f32 %v123, %v338
    %v340 = vpop.f32.mrf.mxu0
    %v341 = vadd.f32 %v127, %v340
    %342 = vmatprep.mubr.bf16.mxu0 0
    %343 = vmatmul.mubr.bf16.gmra.mxu0 %v85
    %v344 = vpop.f32.mrf.mxu0
    %v345 = vadd.f32 %v123, %v344
    %v346 = vpop.f32.mrf.mxu0
    %v347 = vadd.f32 %v127, %v346
    %v348 = vpop.f32.mrf.mxu0
    %v349 = vpop.f32.mrf.mxu0
    %350 = vdwg.mxu0
    %351 = vmatprep.subr.bf16.mxu0 %v267
    %352 = vmatpush1.bf16.msra.mxu0 %v266
    %353 = vmatprep.subr.bf16.mxu0 %v263
    %354 = vmatpush1.bf16.msra.mxu0 %v262
    %355 = vmatprep.subr.bf16.mxu0 %v259
    %356 = vmatpush1.bf16.msra.mxu0 %v258
    %357 = vmatprep.subr.bf16.mxu0 %v255
    %358 = vmatpush1.bf16.msra.mxu0 %v254
    %359 = vmatprep.subr.bf16.mxu0 %v251
    %360 = vmatpush1.bf16.msra.mxu0 %v250
    %361 = vmatprep.subr.bf16.mxu0 %v247
    %362 = vmatpush1.bf16.msra.mxu0 %v246
    %363 = vmatprep.subr.bf16.mxu0 %v243
    %364 = vmatpush1.bf16.msra.mxu0 %v242
    %365 = vmatprep.subr.bf16.mxu0 %v239
    %366 = vmatpush1.bf16.msra.mxu0 %v238
    %367 = vmatprep.subr.bf16.mxu0 0
    %368 = vmatpush2.bf16.msra.mxu0 0
    %369 = vmatprep.subr.bf16.mxu0 0
    %370 = vmatpush2.bf16.msra.mxu0 0
    %371 = vmatprep.subr.bf16.mxu0 0
    %372 = vmatpush2.bf16.msra.mxu0 0
    %373 = vmatprep.subr.bf16.mxu0 0
    %374 = vmatpush2.bf16.msra.mxu0 0
    %375 = vmatprep.subr.bf16.mxu0 0
    %376 = vmatpush2.bf16.msra.mxu0 0
    %377 = vmatprep.subr.bf16.mxu0 0
    %378 = vmatpush2.bf16.msra.mxu0 0
    %379 = vmatprep.subr.bf16.mxu0 0
    %380 = vmatpush2.bf16.msra.mxu0 0
    %381 = vmatprep.subr.bf16.mxu0 0
    %382 = vmatpush2.bf16.msra.mxu0 0
    %383 = vmatprep.mubr.bf16.mxu0 0
    %384 = vmatmul.mubr.bf16.gmra.mxu0 %v84
    %v385 = vpop.f32.mrf.mxu0
    %v386 = vadd.f32 %v131, %v385
    %v387 = vpop.f32.mrf.mxu0
    %v388 = vadd.f32 %v135, %v387
    %v389 = vpop.f32.mrf.mxu0
    %v390 = vadd.f32 %v131, %v389
    %v391 = vpop.f32.mrf.mxu0
    %v392 = vadd.f32 %v135, %v391
    %393 = vmatprep.mubr.bf16.mxu0 0
    %394 = vmatmul.mubr.bf16.gmra.mxu0 %v85
    %v395 = vpop.f32.mrf.mxu0
    %v396 = vadd.f32 %v131, %v395
    %v397 = vpop.f32.mrf.mxu0
    %v398 = vadd.f32 %v135, %v397
    %v399 = vpop.f32.mrf.mxu0
    %v400 = vpop.f32.mrf.mxu0
    %401 = vdwg.mxu0
    %v402 = vmul.f32 %v335, 0.5
    %v403 = vmul.f32 %v337, 0.5
    %v404 = vmul.f32 %v386, 0.5
    %v405 = vmul.f32 %v388, 0.5
    %v406 = vmul.f32 %v339, 0.5
    %v407 = vmul.f32 %v341, 0.5
    %v408 = vmul.f32 %v390, 0.5
    %v409 = vmul.f32 %v392, 0.5
    %v410 = vmul.f32 %v345, 0.5
    %v411 = vmul.f32 %v347, 0.5
    %v412 = vmul.f32 %v396, 0.5
    %v413 = vmul.f32 %v398, 0.5
    %v414 = vmul.f32 %v335, 0.70710677
    %v415 = vmul.f32 %v337, 0.70710677
    %v416 = vmul.f32 %v386, 0.70710677
    %v417 = vmul.f32 %v388, 0.70710677
    %v418 = vmul.f32 %v339, 0.70710677
    %v419 = vmul.f32 %v341, 0.70710677
    %v420 = vmul.f32 %v390, 0.70710677
    %v421 = vmul.f32 %v392, 0.70710677
    %v422 = vmul.f32 %v345, 0.70710677
    %v423 = vmul.f32 %v347, 0.70710677
    %v424 = vmul.f32 %v396, 0.70710677
    %v425 = vmul.f32 %v398, 0.70710677
    %v426 = verf.f32.pop %v414
    %v427 = verf.f32.pop %v415
    %v428 = verf.f32.pop %v416
    %v429 = verf.f32.pop %v417
    %v430 = verf.f32.pop %v418
    %v431 = verf.f32.pop %v419
    %v432 = verf.f32.pop %v420
    %v433 = verf.f32.pop %v421
    %v434 = verf.f32.pop %v422
    %v435 = verf.f32.pop %v423
    %v436 = verf.f32.pop %v424
    %v437 = verf.f32.pop %v425
    %v438 = vadd.f32 %v426, 1.0
    %v439 = vadd.f32 %v427, 1.0
    %v440 = vadd.f32 %v428, 1.0
    %v441 = vadd.f32 %v429, 1.0
    %v442 = vadd.f32 %v430, 1.0
    %v443 = vadd.f32 %v431, 1.0
    %v444 = vadd.f32 %v432, 1.0
    %v445 = vadd.f32 %v433, 1.0
    %v446 = vadd.f32 %v434, 1.0
    %v447 = vadd.f32 %v435, 1.0
    %v448 = vadd.f32 %v436, 1.0
    %v449 = vadd.f32 %v437, 1.0
    %v450 = vmul.f32 %v402, %v438
    %v451 = vmul.f32 %v403, %v439
    %v452 = vmul.f32 %v404, %v440
    %v453 = vmul.f32 %v405, %v441
    %v454 = vmul.f32 %v406, %v442
    %v455 = vmul.f32 %v407, %v443
    %v456 = vmul.f32 %v408, %v444
    %v457 = vmul.f32 %v409, %v445
    %v458 = vmul.f32 %v410, %v446
    %v459 = vmul.f32 %v411, %v447
    %v460 = vmul.f32 %v412, %v448
    %v461 = vmul.f32 %v413, %v449
    %v462 = vpack.c.bf16 %v454, %v450
    %v463 = vpack.c.bf16 %v455, %v451
    %v464 = vpack.c.bf16 %v456, %v452
    %v465 = vpack.c.bf16 %v457, %v453
    %v466 = vpack.c.bf16 %v458, %v458
    %v467 = vpack.c.bf16 %v459, %v459
    %v468 = vpack.c.bf16 %v460, %v460
    %v469 = vpack.c.bf16 %v461, %v461
    %v470 = vld [vmem:[#allocation8] sm:$0xf]
    %v471 = vld [vmem:[#allocation8 + $0x4] sm:$0xf]
    %v472 = vld [vmem:[#allocation8 + $0x8] sm:$0xf]
    %v473 = vld [vmem:[#allocation8 + $0xc] sm:$0xf]
    %v474 = vld [vmem:[#allocation8 + $0x10] sm:$0xf]
    %v475 = vld [vmem:[#allocation8 + $0x14] sm:$0xf]
    %v476 = vld [vmem:[#allocation8 + $0x18] sm:$0xf]
    %v477 = vld [vmem:[#allocation8 + $0x1c] sm:$0xf]
    %v478 = vld [vmem:[#allocation8 + $0x20] sm:$0xf]
    %v479 = vld [vmem:[#allocation8 + $0x24] sm:$0xf]
    %v480 = vld [vmem:[#allocation8 + $0x28] sm:$0xf]
    %v481 = vld [vmem:[#allocation8 + $0x2c] sm:$0xf]
    %v482 = vld [vmem:[#allocation8 + $0x30] sm:$0xf]
    %v483 = vld [vmem:[#allocation8 + $0x34] sm:$0xf]
    %v484 = vld [vmem:[#allocation8 + $0x38] sm:$0xf]
    %v485 = vld [vmem:[#allocation8 + $0x3c] sm:$0xf]
    %v486 = vld [vmem:[#allocation8 + $0x40] sm:$0xf]
    %v487 = vld [vmem:[#allocation8 + $0x44] sm:$0xf]
    %v488 = vld [vmem:[#allocation8 + $0x48] sm:$0xf]
    %v489 = vld [vmem:[#allocation8 + $0x4c] sm:$0xf]
    %v490 = vld [vmem:[#allocation8 + $0x50] sm:$0xf]
    %v491 = vld [vmem:[#allocation8 + $0x54] sm:$0xf]
    %v492 = vld [vmem:[#allocation8 + $0x58] sm:$0xf]
    %v493 = vld [vmem:[#allocation8 + $0x5c] sm:$0xf]
    %v494 = vld [vmem:[#allocation8 + $0x60] sm:$0xf]
    %v495 = vld [vmem:[#allocation8 + $0x64] sm:$0xf]
    %v496 = vld [vmem:[#allocation8 + $0x68] sm:$0xf]
    %v497 = vld [vmem:[#allocation8 + $0x6c] sm:$0xf]
    %v498 = vld [vmem:[#allocation8 + $0x70] sm:$0xf]
    %v499 = vld [vmem:[#allocation8 + $0x74] sm:$0xf]
    %v500 = vld [vmem:[#allocation8 + $0x78] sm:$0xf]
    %v501 = vld [vmem:[#allocation8 + $0x7c] sm:$0xf]
    %v502 = vld [vmem:[#allocation8 + $0x80] sm:$0xf]
    %v503 = vld [vmem:[#allocation8 + $0x84] sm:$0xf]
    %v504 = vld [vmem:[#allocation8 + $0x88] sm:$0xf]
    %v505 = vld [vmem:[#allocation8 + $0x8c] sm:$0xf]
    %v506 = vld [vmem:[#allocation8 + $0x90] sm:$0xf]
    %v507 = vld [vmem:[#allocation8 + $0x94] sm:$0xf]
    %v508 = vld [vmem:[#allocation8 + $0x98] sm:$0xf]
    %v509 = vld [vmem:[#allocation8 + $0x9c] sm:$0xf]
    %v510 = vld [vmem:[#allocation8 + $0xa0] sm:$0xf]
    %v511 = vld [vmem:[#allocation8 + $0xa4] sm:$0xf]
    %v512 = vld [vmem:[#allocation8 + $0xa8] sm:$0xf]
    %v513 = vld [vmem:[#allocation8 + $0xac] sm:$0xf]
    %v514 = vld [vmem:[#allocation8 + $0xb0] sm:$0xf]
    %v515 = vld [vmem:[#allocation8 + $0xb4] sm:$0xf]
    %v516 = vld [vmem:[#allocation8 + $0xb8] sm:$0xf]
    %v517 = vld [vmem:[#allocation8 + $0xbc] sm:$0xf]
    %v518 = vld [vmem:[#allocation8 + $0xc0] sm:$0xf]
    %v519 = vld [vmem:[#allocation8 + $0xc4] sm:$0xf]
    %v520 = vld [vmem:[#allocation8 + $0xc8] sm:$0xf]
    %v521 = vld [vmem:[#allocation8 + $0xcc] sm:$0xf]
    %v522 = vld [vmem:[#allocation8 + $0xd0] sm:$0xf]
    %v523 = vld [vmem:[#allocation8 + $0xd4] sm:$0xf]
    %v524 = vld [vmem:[#allocation8 + $0xd8] sm:$0xf]
    %v525 = vld [vmem:[#allocation8 + $0xdc] sm:$0xf]
    %v526 = vld [vmem:[#allocation8 + $0xe0] sm:$0xf]
    %v527 = vld [vmem:[#allocation8 + $0xe4] sm:$0xf]
    %v528 = vld [vmem:[#allocation8 + $0xe8] sm:$0xf]
    %v529 = vld [vmem:[#allocation8 + $0xec] sm:$0xf]
    %v530 = vld [vmem:[#allocation8 + $0xf0] sm:$0xf]
    %v531 = vld [vmem:[#allocation8 + $0xf4] sm:$0xf]
    %v532 = vld [vmem:[#allocation8 + $0xf8] sm:$0xf]
    %v533 = vld [vmem:[#allocation8 + $0xfc] sm:$0xf]
    %v534 = vld [vmem:[%s4] sm:$0x1]
    %v536 = vlaneseq
    %v537 = vshrl.u32 %v536, 7
    %v538 = vsub.s32 0, %v537
    %v539 = vrot.slane %v534, %v538
    %v605 = vunpack.c.l.b16 %v470
    %v606 = vunpack.c.l.b16 %v471
    %v607 = vunpack.c.l.b16 %v472
    %v608 = vunpack.c.l.b16 %v473
    %v609 = vunpack.c.l.b16 %v474
    %v610 = vunpack.c.l.b16 %v475
    %v611 = vunpack.c.l.b16 %v476
    %v612 = vunpack.c.l.b16 %v477
    %v613 = vunpack.c.l.b16 %v478
    %v614 = vunpack.c.l.b16 %v479
    %v615 = vunpack.c.l.b16 %v480
    %v616 = vunpack.c.l.b16 %v481
    %v617 = vunpack.c.l.b16 %v482
    %v618 = vunpack.c.l.b16 %v483
    %v619 = vunpack.c.l.b16 %v484
    %v620 = vunpack.c.l.b16 %v485
    %v621 = vunpack.c.l.b16 %v486
    %v622 = vunpack.c.l.b16 %v487
    %v623 = vunpack.c.l.b16 %v488
    %v624 = vunpack.c.l.b16 %v489
    %v625 = vunpack.c.l.b16 %v490
    %v626 = vunpack.c.l.b16 %v491
    %v627 = vunpack.c.l.b16 %v492
    %v628 = vunpack.c.l.b16 %v493
    %v629 = vunpack.c.l.b16 %v494
    %v630 = vunpack.c.l.b16 %v495
    %v631 = vunpack.c.l.b16 %v496
    %v632 = vunpack.c.l.b16 %v497
    %v633 = vunpack.c.l.b16 %v498
    %v634 = vunpack.c.l.b16 %v499
    %v635 = vunpack.c.l.b16 %v500
    %v636 = vunpack.c.l.b16 %v501
    %v637 = vunpack.c.l.b16 %v502
    %v638 = vunpack.c.l.b16 %v503
    %v639 = vunpack.c.l.b16 %v504
    %v640 = vunpack.c.l.b16 %v505
    %v641 = vunpack.c.l.b16 %v506
    %v642 = vunpack.c.l.b16 %v507
    %v643 = vunpack.c.l.b16 %v508
    %v644 = vunpack.c.l.b16 %v509
    %v645 = vunpack.c.l.b16 %v510
    %v646 = vunpack.c.l.b16 %v511
    %v647 = vunpack.c.l.b16 %v512
    %v648 = vunpack.c.l.b16 %v513
    %v649 = vunpack.c.l.b16 %v514
    %v650 = vunpack.c.l.b16 %v515
    %v651 = vunpack.c.l.b16 %v516
    %v652 = vunpack.c.l.b16 %v517
    %v653 = vunpack.c.l.b16 %v518
    %v654 = vunpack.c.l.b16 %v519
    %v655 = vunpack.c.l.b16 %v520
    %v656 = vunpack.c.l.b16 %v521
    %v657 = vunpack.c.l.b16 %v522
    %v658 = vunpack.c.l.b16 %v523
    %v659 = vunpack.c.l.b16 %v524
    %v660 = vunpack.c.l.b16 %v525
    %v661 = vunpack.c.l.b16 %v526
    %v662 = vunpack.c.l.b16 %v527
    %v663 = vunpack.c.l.b16 %v528
    %v664 = vunpack.c.l.b16 %v529
    %v665 = vunpack.c.l.b16 %v530
    %v666 = vunpack.c.l.b16 %v531
    %v667 = vunpack.c.l.b16 %v532
    %v668 = vunpack.c.l.b16 %v533
    %v669 = vpack.c.b16 %v606, %v605
    %v670 = vpack.c.b16 %v608, %v607
    %v671 = vpack.c.b16 %v610, %v609
    %v672 = vpack.c.b16 %v612, %v611
    %v673 = vpack.c.b16 %v614, %v613
    %v674 = vpack.c.b16 %v616, %v615
    %v675 = vpack.c.b16 %v618, %v617
    %v676 = vpack.c.b16 %v620, %v619
    %v677 = vpack.c.b16 %v622, %v621
    %v678 = vpack.c.b16 %v624, %v623
    %v679 = vpack.c.b16 %v626, %v625
    %v680 = vpack.c.b16 %v628, %v627
    %v681 = vpack.c.b16 %v630, %v629
    %v682 = vpack.c.b16 %v632, %v631
    %v683 = vpack.c.b16 %v634, %v633
    %v684 = vpack.c.b16 %v636, %v635
    %v685 = vpack.c.b16 %v638, %v637
    %v686 = vpack.c.b16 %v640, %v639
    %v687 = vpack.c.b16 %v642, %v641
    %v688 = vpack.c.b16 %v644, %v643
    %v689 = vpack.c.b16 %v646, %v645
    %v690 = vpack.c.b16 %v648, %v647
    %v691 = vpack.c.b16 %v650, %v649
    %v692 = vpack.c.b16 %v652, %v651
    %v693 = vpack.c.b16 %v654, %v653
    %v694 = vpack.c.b16 %v656, %v655
    %v695 = vpack.c.b16 %v658, %v657
    %v696 = vpack.c.b16 %v660, %v659
    %v697 = vpack.c.b16 %v662, %v661
    %v698 = vpack.c.b16 %v664, %v663
    %v699 = vpack.c.b16 %v666, %v665
    %v700 = vpack.c.b16 %v668, %v667
    %733 = vmatprep.subr.bf16.mxu0 0
    %734 = vmatpush1.bf16.msra.mxu0 %v676
    %735 = vmatprep.subr.bf16.mxu0 0
    %736 = vmatpush1.bf16.msra.mxu0 %v675
    %737 = vmatprep.subr.bf16.mxu0 0
    %738 = vmatpush1.bf16.msra.mxu0 %v674
    %739 = vmatprep.subr.bf16.mxu0 0
    %740 = vmatpush1.bf16.msra.mxu0 %v673
    %741 = vmatprep.subr.bf16.mxu0 0
    %742 = vmatpush1.bf16.msra.mxu0 %v672
    %743 = vmatprep.subr.bf16.mxu0 0
    %744 = vmatpush1.bf16.msra.mxu0 %v671
    %745 = vmatprep.subr.bf16.mxu0 0
    %746 = vmatpush1.bf16.msra.mxu0 %v670
    %747 = vmatprep.subr.bf16.mxu0 0
    %748 = vmatpush1.bf16.msra.mxu0 %v669
    %749 = vmatprep.subr.bf16.mxu0 0
    %750 = vmatpush2.bf16.msra.mxu0 %v684
    %751 = vmatprep.subr.bf16.mxu0 0
    %752 = vmatpush2.bf16.msra.mxu0 %v683
    %753 = vmatprep.subr.bf16.mxu0 0
    %754 = vmatpush2.bf16.msra.mxu0 %v682
    %755 = vmatprep.subr.bf16.mxu0 0
    %756 = vmatpush2.bf16.msra.mxu0 %v681
    %757 = vmatprep.subr.bf16.mxu0 0
    %758 = vmatpush2.bf16.msra.mxu0 %v680
    %759 = vmatprep.subr.bf16.mxu0 0
    %760 = vmatpush2.bf16.msra.mxu0 %v679
    %761 = vmatprep.subr.bf16.mxu0 0
    %762 = vmatpush2.bf16.msra.mxu0 %v678
    %763 = vmatprep.subr.bf16.mxu0 0
    %764 = vmatpush2.bf16.msra.mxu0 %v677
    %765 = vmatprep.mubr.bf16.mxu0 %v463
    %766 = vmatmul.mubr.bf16.gmra.mxu0 %v462
    %v767 = vpop.f32.mrf.mxu0
    %v768 = vadd.f32 %v539, %v767
    %v769 = vpop.f32.mrf.mxu0
    %v770 = vpop.f32.mrf.mxu0
    %v771 = vadd.f32 %v539, %v770
    %v772 = vpop.f32.mrf.mxu0
    %773 = vmatprep.mubr.bf16.mxu0 %v467
    %774 = vmatmul.mubr.bf16.gmra.mxu0 %v466
    %v775 = vpop.f32.mrf.mxu0
    %v776 = vadd.f32 %v539, %v775
    %v777 = vpop.f32.mrf.mxu0
    %v778 = vpop.f32.mrf.mxu0
    %v779 = vpop.f32.mrf.mxu0
    %780 = vdwg.mxu0
    %781 = vmatprep.subr.bf16.mxu0 0
    %782 = vmatpush1.bf16.msra.mxu0 %v692
    %783 = vmatprep.subr.bf16.mxu0 0
    %784 = vmatpush1.bf16.msra.mxu0 %v691
    %785 = vmatprep.subr.bf16.mxu0 0
    %786 = vmatpush1.bf16.msra.mxu0 %v690
    %787 = vmatprep.subr.bf16.mxu0 0
    %788 = vmatpush1.bf16.msra.mxu0 %v689
    %789 = vmatprep.subr.bf16.mxu0 0
    %790 = vmatpush1.bf16.msra.mxu0 %v688
    %791 = vmatprep.subr.bf16.mxu0 0
    %792 = vmatpush1.bf16.msra.mxu0 %v687
    %793 = vmatprep.subr.bf16.mxu0 0
    %794 = vmatpush1.bf16.msra.mxu0 %v686
    %795 = vmatprep.subr.bf16.mxu0 0
    %796 = vmatpush1.bf16.msra.mxu0 %v685
    %797 = vmatprep.subr.bf16.mxu0 0
    %798 = vmatpush2.bf16.msra.mxu0 %v700
    %799 = vmatprep.subr.bf16.mxu0 0
    %800 = vmatpush2.bf16.msra.mxu0 %v699
    %801 = vmatprep.subr.bf16.mxu0 0
    %802 = vmatpush2.bf16.msra.mxu0 %v698
    %803 = vmatprep.subr.bf16.mxu0 0
    %804 = vmatpush2.bf16.msra.mxu0 %v697
    %805 = vmatprep.subr.bf16.mxu0 0
    %806 = vmatpush2.bf16.msra.mxu0 %v696
    %807 = vmatprep.subr.bf16.mxu0 0
    %808 = vmatpush2.bf16.msra.mxu0 %v695
    %809 = vmatprep.subr.bf16.mxu0 0
    %810 = vmatpush2.bf16.msra.mxu0 %v694
    %811 = vmatprep.subr.bf16.mxu0 0
    %812 = vmatpush2.bf16.msra.mxu0 %v693
    %813 = vmatprep.mubr.bf16.mxu0 %v465
    %814 = vmatmul.mubr.bf16.gmra.mxu0 %v464
    %v815 = vpop.f32.mrf.mxu0
    %v816 = vadd.f32 %v768, %v815
    %v817 = vpop.f32.mrf.mxu0
    %v818 = vpop.f32.mrf.mxu0
    %v819 = vadd.f32 %v771, %v818
    %v820 = vpop.f32.mrf.mxu0
    %821 = vmatprep.mubr.bf16.mxu0 %v469
    %822 = vmatmul.mubr.bf16.gmra.mxu0 %v468
    %v823 = vpop.f32.mrf.mxu0
    %v824 = vadd.f32 %v776, %v823
    %v825 = vpop.f32.mrf.mxu0
    %v826 = vpop.f32.mrf.mxu0
    %v827 = vpop.f32.mrf.mxu0
    %828 = vdwg.mxu0
    %v829 = vld [vmem:[%s5] sm:$0x1]
    %v830 = vld [vmem:[%s6] sm:$0x1]
    %v831 = vadd.f32 %v81, %v816
    %v832 = vadd.f32 %v82, %v819
    %v833 = vadd.f32 %v83, %v824
    %834 = vadd.xlane.f32.xlu0 %v831
    %v835 = vpop.xlane.xlu0 %834
    %836 = vadd.xlane.f32.xlu0 %v832
    %v837 = vpop.xlane.xlu0 %836
    %838 = vadd.xlane.f32.xlu0 %v833
    %v839 = vpop.xlane.xlu0 %838
    %v840 = vrcp.pop 128.0
    %v841 = vmul.f32 %v835, %v840
    %v842 = vmul.f32 %v837, %v840
    %v843 = vmul.f32 %v839, %v840
    %v844 = vsub.f32 %v831, %v841
    %v845 = vsub.f32 %v832, %v842
    %v846 = vsub.f32 %v833, %v843
    %v847 = vmul.f32 %v844, %v844
    %v848 = vmul.f32 %v845, %v845
    %v849 = vmul.f32 %v846, %v846
    %850 = vadd.xlane.f32.xlu0 %v847
    %v851 = vpop.xlane.xlu0 %850
    %852 = vadd.xlane.f32.xlu0 %v848
    %v853 = vpop.xlane.xlu0 %852
    %854 = vadd.xlane.f32.xlu0 %v849
    %v855 = vpop.xlane.xlu0 %854
    %v856 = vmul.f32 %v851, %v840
    %v857 = vmul.f32 %v853, %v840
    %v858 = vmul.f32 %v855, %v840
    %v859 = vadd.f32 %v856, 1e-12
    %v860 = vadd.f32 %v857, 1e-12
    %v861 = vadd.f32 %v858, 1e-12
    %v862 = vrsqrt.pop %v859
    %v863 = vrsqrt.pop %v860
    %v864 = vrsqrt.pop %v861
    %v865 = vmul.f32 %v844, %v862
    %v866 = vmul.f32 %v845, %v863
    %v867 = vmul.f32 %v846, %v864
    %v869 = vlaneseq
    %v870 = vshrl.u32 %v869, 7
    %v871 = vsub.s32 0, %v870
    %v872 = vrot.slane %v829, %v871
    %v874 = vmul.f32 %v865, %v872
    %v875 = vmul.f32 %v866, %v872
    %v876 = vmul.f32 %v867, %v872
    %v878 = vlaneseq
    %v879 = vshrl.u32 %v878, 7
    %v880 = vsub.s32 0, %v879
    %v881 = vrot.slane %v830, %v880
    %v883 = vadd.f32 %v874, %v881
    %v884 = vadd.f32 %v875, %v881
    %v885 = vadd.f32 %v876, %v881
    %886 = vst [vmem:[#allocation10] sm:$0xff] %v883
    %887 = vst [vmem:[#allocation10 + $0x8] sm:$0xff] %v884
    %888 = vst [vmem:[#allocation10 + $0x10] sm:$0xff] %v885
    // Predicated region
    $region46: #{tpu_custom_call.1} parent=1 // pred_check
      _
    $region47: #{tpu_custom_call.1} parent=1 // pred_check_branch
      %890 = sbr.rel (0) target = $region49
    $region48: #{tpu_custom_call.1} parent=1 // pred_region
      %s892 = ssub.s32 384, 384
      %893 = vsyncadd [#allocation4], %s892
      %s894 = sshll.u32 [#allocation10], 4
      %s895 = int_to_ptr.vmem [resolvable:$true] %s894
      %900 = dma.vmem_to_hbm [thread:$0]  %s895, 384, %s7, [#allocation4], 128, 128, 8
    $region49: #{tpu_custom_call.1} parent=1 // pred_fallthru
      _
    // Predicated region
    $region50: #{tpu_custom_call.1} parent=1 // pred_check
      _
    $region51: #{tpu_custom_call.1} parent=1 // pred_check_branch
      %902 = sbr.rel (0) target = $region53
    $region52: #{tpu_custom_call.1} parent=1 // pred_region
      %903 = dma.done [#allocation4], 384
    $region53: #{tpu_custom_call.1} parent=1 // pred_fallthru
      _
    %904 = vsyncpa [#allocation3], 1
    %905 = vsyncpa [#allocation6], 1
    %906 = vsyncpa [#allocation9], 1
    %907 = vsyncpa [#allocation4], 1

</llo_original>
